<compile_context>
chip_gen: v7x
topology: tpu7x:2x2x1
jax: 0.10.0
libtpu: 0.0.40
codegen_flags: <defaults>
</compile_context>

<pallas_src>
import functools

import jax
import jax.numpy as jnp
from jax.experimental import pallas as pl
from jax.experimental.pallas import tpu as pltpu


def _round_up(v, m):
    return ((v + m - 1) // m) * m


def _cdiv(a, b):
    return (a + b - 1) // b


# minimum sublane multiple per dtype itemsize (f32 -> 8, bf16 -> 16, int8/fp8 -> 32)
_SUBLANE_BY_ITEMSIZE = {4: 8, 2: 16, 1: 32}


def _physical_vmem_bytes():
    try:
        return int(pltpu.get_tpu_info().vmem_capacity_bytes)
    except Exception:
        return 64 * 1024 * 1024  # conservative: v7x per-TC VMEM


def _binactive_kernel(x_ref, o_ref, *, feat):
    x = x_ref[...]                                  # (tile_n, gf) block in VMEM
    gf = x.shape[1]
    ax = jnp.abs(x)
    if gf == feat:
        # Plain path: feature axis is whole in the block -> per-row mean.
        alpha = jnp.mean(ax, axis=1, keepdims=True)             # (tile_n, 1)
    else:
        # Folded small-F path: gf = groups * feat (== 128). Per-group mean,
        # broadcast back across each group's lanes, via a block-diagonal
        # group-sum matmul — stays 2D and lane-dense, MXU does the reduction.
        r = jax.lax.broadcasted_iota(jnp.int32, (gf, gf), 0) // feat
        c = jax.lax.broadcasted_iota(jnp.int32, (gf, gf), 1) // feat
        s = jnp.where(r == c, jnp.asarray(1.0 / feat, x.dtype),
                      jnp.zeros((), x.dtype))
        alpha = jnp.dot(ax, s, precision=jax.lax.Precision.HIGHEST,
                        preferred_element_type=jnp.float32).astype(x.dtype)
    zero = jnp.zeros((), x.dtype)
    # alpha * sign(x) with sign(0) == 0, as selects (alpha >= 0)
    o_ref[...] = jnp.where(x > 0, alpha, jnp.where(x < 0, -alpha, zero))


def bin_active(x, *, tile_n=None, donate_input=False):
    """BinActive forward. x: (N, F). Handles ragged N without pad/slice."""
    n, f = x.shape
    itemsize = jnp.dtype(x.dtype).itemsize
    sublane = _SUBLANE_BY_ITEMSIZE.get(itemsize, 8)

    # Lane-dense folding for small F: (N, F) -> (N // g, g*F) with g*F == 128.
    # Each reshaped row holds g whole original rows, so per-row alphas stay
    # independent (a contiguous reshape — no data movement).
    groups = 1
    if f < 128 and 128 % f == 0 and n % (128 // f) == 0:
        groups = 128 // f
    n2 = n // groups
    gf = f * groups
    x2 = x.reshape(n2, gf) if groups > 1 else x

    # Real VMEM footprint per row, including (8,128) lane padding.
    f_pad = _round_up(gf, 128)
    row_bytes = f_pad * itemsize

    vmem_limit = min(_physical_vmem_bytes() - 8 * 1024 * 1024, 64 * 1024 * 1024)

    auto_tile = tile_n is None
    if auto_tile:
        # ~8 MiB per buffer; in + out double-buffered = 4 buffers + headroom.
        per_buf = min(8 * 1024 * 1024, vmem_limit // 6)
        tile_n = max(sublane, (per_buf // row_bytes) // sublane * sublane)
    tile_n = min(tile_n, _round_up(n2, sublane))
    assert tile_n % sublane == 0, "tile_n must be a sublane multiple for this dtype"

    if 4 * sublane * row_bytes > vmem_limit:
        # TODO(synk): for very wide F, split F across a second ("arbitrary") grid
        # axis with a VMEM alpha accumulator (pl.when init/finalize) instead.
        raise NotImplementedError("feature dim too wide for single-axis tiling")

    grid_n = _cdiv(n2, tile_n)
    # Prefer an even step count so v7x's two TensorCores get equal work
    # (harmless on single-TC v5e/v6e). Only when the tile was auto-chosen.
    if auto_tile and grid_n > 1 and grid_n % 2 == 1:
        t2 = _round_up(_cdiv(n2, grid_n + 1), sublane)
        if _cdiv(n2, t2) % 2 == 0:
            tile_n, grid_n = t2, _cdiv(n2, t2)

    kernel = functools.partial(_binactive_kernel, feat=f)
    out2 = pl.pallas_call(
        kernel,
        out_shape=jax.ShapeDtypeStruct((n2, gf), x.dtype),
        grid=(grid_n,),
        in_specs=[pl.BlockSpec((tile_n, gf), lambda i: (i, 0))],
        out_specs=pl.BlockSpec((tile_n, gf), lambda i: (i, 0)),
        input_output_aliases=({0: 0} if donate_input else {}),
        cost_estimate=pl.CostEstimate(
            flops=4 * n * f,
            transcendentals=0,
            bytes_accessed=2 * n * f * itemsize,
        ),
        compiler_params=pltpu.CompilerParams(
            dimension_semantics=("parallel",),
            vmem_limit_bytes=vmem_limit,
        ),
    )(x2)
    return out2.reshape(n, f) if groups > 1 else out2


def _reference(x):
    # Pure-JAX reference mirroring the PyTorch forward
    alpha = jnp.sum(jnp.abs(x), axis=1, keepdims=True) / x.shape[1]
    return alpha * jnp.sign(x)


if __name__ == "__main__":
    key = jax.random.PRNGKey(0)
    k1, k2, k3, k4 = jax.random.split(key, 4)

    # 1) Lane-dense case: 64 x 128 (F multiple of 128), single block.
    x1 = jax.random.normal(k1, (64, 128), dtype=jnp.float32)
    o1 = bin_active(x1)
    jax.block_until_ready(o1)
    assert o1.shape == x1.shape and o1.dtype == x1.dtype
    assert jnp.allclose(o1, _reference(x1), atol=1e-5, rtol=1e-5)

    # 2) Small-F folded path: 64 x 32 -> (16, 128) lane-dense blocks, g=4.
    x2 = jax.random.normal(k2, (64, 32), dtype=jnp.float32)
    o2 = bin_active(x2)
    jax.block_until_ready(o2)
    assert o2.shape == x2.shape and o2.dtype == x2.dtype
    assert jnp.allclose(o2, _reference(x2), atol=1e-5, rtol=1e-5)

    # 3) Ragged N + small F (fold not applicable): partial last block, no pad/slice.
    x3 = jax.random.normal(k3, (50, 32), dtype=jnp.float32)
    o3 = bin_active(x3)
    jax.block_until_ready(o3)
    assert o3.shape == x3.shape and o3.dtype == x3.dtype
    assert jnp.allclose(o3, _reference(x3), atol=1e-5, rtol=1e-5)

    # 4) Multi-step grid with a partial last block (explicit tile_n).
    x4 = jax.random.normal(k4, (300, 256), dtype=jnp.float32)
    o4 = bin_active(x4, tile_n=128)
    jax.block_until_ready(o4)
    assert o4.shape == x4.shape and o4.dtype == x4.dtype
    assert jnp.allclose(o4, _reference(x4), atol=1e-5, rtol=1e-5)

    # TODO(synk): backward (straight-through estimator, |x|<=1 mask) not implemented — forward only per spec.
    print("KERNEL_OK")
</pallas_src>

<mosaic_0001>
module attributes {stable_mosaic.version = 11 : i64} {
  func.func @_binactive_kernel(%arg0: i32, %arg1: memref<64x128xf32, #tpu.memory_space<vmem>>, %arg2: memref<64x128xf32, #tpu.memory_space<vmem>>) attributes {dimension_semantics = [#tpu.dimension_semantics<parallel>], iteration_bounds = array<i64: 1>, scalar_prefetch = 0 : i64, scratch_operands = 0 : i64, tpu.core_type = #tpu.core_type<tc>, window_params = [{transform_indices = @transform_0, window_bounds = array<i64: 64, 128>}, {transform_indices = @transform_1, window_bounds = array<i64: 64, 128>}]} {
    %c0 = arith.constant 0 : index
    %c0_0 = arith.constant 0 : index
    %0 = vector.load %arg1[%c0, %c0_0] : memref<64x128xf32, #tpu.memory_space<vmem>>, vector<64x128xf32>
    %1 = math.absf %0 : vector<64x128xf32>
    %cst = arith.constant dense<0.000000e+00> : vector<64xf32>
    %2 = vector.multi_reduction <add>, %1, %cst [1] : vector<64x128xf32> to vector<64xf32>
    %3 = vector.shape_cast %2 : vector<64xf32> to vector<64x1xf32>
    %cst_1 = arith.constant 1.280000e+02 : f32
    %4 = vector.broadcast %cst_1 : f32 to vector<64x1xf32>
    %5 = arith.divf %3, %4 : vector<64x1xf32>
    %cst_2 = arith.constant 0.000000e+00 : f32
    %6 = vector.broadcast %cst_2 : f32 to vector<64x128xf32>
    %7 = arith.cmpf ogt, %0, %6 : vector<64x128xf32>
    %cst_3 = arith.constant 0.000000e+00 : f32
    %8 = vector.broadcast %cst_3 : f32 to vector<64x128xf32>
    %9 = arith.cmpf olt, %0, %8 : vector<64x128xf32>
    %cst_4 = arith.constant 0.000000e+00 : f32
    %10 = vector.broadcast %cst_4 : f32 to vector<64x1xf32>
    %11 = arith.subf %10, %5 : vector<64x1xf32>
    %cst_5 = arith.constant 0.000000e+00 : f32
    %12 = vector.shape_cast %11 : vector<64x1xf32> to vector<64x1xf32>
    %13 = vector.broadcast %12 : vector<64x1xf32> to vector<64x128xf32>
    %14 = vector.broadcast %cst_5 : f32 to vector<64x128xf32>
    %15 = arith.select %9, %13, %14 : vector<64x128xi1>, vector<64x128xf32>
    %16 = vector.shape_cast %5 : vector<64x1xf32> to vector<64x1xf32>
    %17 = vector.broadcast %16 : vector<64x1xf32> to vector<64x128xf32>
    %18 = arith.select %7, %17, %15 : vector<64x128xi1>, vector<64x128xf32>
    %c0_6 = arith.constant 0 : index
    %c0_7 = arith.constant 0 : index
    %19 = vector.load %arg2[%c0_6, %c0_7] : memref<64x128xf32, #tpu.memory_space<vmem>>, vector<64x128xf32>
    tpu.vector_store %arg2[%c0_6, %c0_7], %18 {strides = array<i32>} : memref<64x128xf32, #tpu.memory_space<vmem>>, vector<64x128xf32>,
    return
  }
  func.func @transform_0(%arg0: i32) -> (i32, i32) {
    %c0_i32 = arith.constant 0 : i32
    %c0_i32_0 = arith.constant 0 : i32
    return %arg0, %c0_i32 : i32, i32
  }
  func.func @transform_1(%arg0: i32) -> (i32, i32) {
    %c0_i32 = arith.constant 0 : i32
    %c0_i32_0 = arith.constant 0 : i32
    return %arg0, %c0_i32 : i32, i32
  }
}

</mosaic_0001>

<llo_original>
// kernel: tpu_custom_call.1
$region0: #{tpu_custom_call.1}
  #allocation0 [shape = 'u32[]', space=smem, size = 0x4, offset = 0x4, fixed_abs, tag = 'smem constant byte address 0x4 - core index']
  #allocation1 [shape = 'u32[144,128]{1,0:T(1,128)}', space=vmem, size = 0x12000, scoped, tag = 'internal scratch']
  %s0 = inlined_call_operand.hbm [shape: f32[64,128], index: 0, kind: input, shape index: {}]
  %s1 = inlined_call_operand.hbm [shape: f32[64,128], index: 1, kind: output, shape index: {}]
  %s2 = sld [smem:[#allocation0]]
  $region18: #{tpu_custom_call.1} parent=0
    _
  %s4 = ssub.s32 1, %s2
  %s5 = scalar_select 0, %s4, %s2
  $region1: #{tpu_custom_call.1} parent=0
    #allocation2 [shape = 'u8[32768]{0}', space=vmem, size = 0x8000, scoped, tag = 'input window, operand 0, single buffered']
    #allocation3 [shape = 's32[1]{0}', space=sflag, size = 0x4, scoped, tag = 'scoped memory for tpu_custom_call.1']
    #allocation4 [shape = 's32[1]{0}', space=sflag, size = 0x4, scoped, tag = 'scoped memory for tpu_custom_call.1']
    #allocation5 [shape = 'u8[32768]{0}', space=vmem, size = 0x8000, scoped, tag = 'output window, operand 0, single buffered']
    %6 = vsyncpa [#allocation3], 0
    %7 = vsyncpa [#allocation4], 0
    // Predicated region
    $region2: #{tpu_custom_call.1} parent=1 // pred_check
      _
    $region3: #{tpu_custom_call.1} parent=1 // pred_check_branch
      %9 = sbr.rel (0) target = $region5
    $region4: #{tpu_custom_call.1} parent=1 // pred_region
      %s11 = ssub.s32 1024, 1024
      %12 = vsyncadd [#allocation3], %s11
      %s13 = sshll.u32 [#allocation2], 4
      %s14 = int_to_ptr.vmem [resolvable:$true] %s13
      %19 = dma.hbm_to_vmem [thread:$0]  %s0, 1024, %s14, [#allocation3], 128, 128, 8
    $region5: #{tpu_custom_call.1} parent=1 // pred_fallthru
      _
    // Predicated region
    $region6: #{tpu_custom_call.1} parent=1 // pred_check
      _
    $region7: #{tpu_custom_call.1} parent=1 // pred_check_branch
      %21 = sbr.rel (0) target = $region9
    $region8: #{tpu_custom_call.1} parent=1 // pred_region
      %22 = dma.done [#allocation3], 1024
    $region9: #{tpu_custom_call.1} parent=1 // pred_fallthru
      _
    %v23 = vld [vmem:[#allocation2] sm:$0xff]
    %v24 = vld [vmem:[#allocation2 + $0x8] sm:$0xff]
    %v25 = vld [vmem:[#allocation2 + $0x10] sm:$0xff]
    %v26 = vld [vmem:[#allocation2 + $0x18] sm:$0xff]
    %v27 = vld [vmem:[#allocation2 + $0x20] sm:$0xff]
    %v28 = vld [vmem:[#allocation2 + $0x28] sm:$0xff]
    %v29 = vld [vmem:[#allocation2 + $0x30] sm:$0xff]
    %v30 = vld [vmem:[#allocation2 + $0x38] sm:$0xff]
    %v31 = vand.u32 2147483647, %v23
    %v32 = vand.u32 2147483647, %v24
    %v33 = vand.u32 2147483647, %v25
    %v34 = vand.u32 2147483647, %v26
    %v35 = vand.u32 2147483647, %v27
    %v36 = vand.u32 2147483647, %v28
    %v37 = vand.u32 2147483647, %v29
    %v38 = vand.u32 2147483647, %v30
    %39 = vadd.xlane.f32.xlu0 %v31
    %v40 = vpop.xlane.xlu0 %39
    %41 = vadd.xlane.f32.xlu0 %v32
    %v42 = vpop.xlane.xlu0 %41
    %43 = vadd.xlane.f32.xlu0 %v33
    %v44 = vpop.xlane.xlu0 %43
    %45 = vadd.xlane.f32.xlu0 %v34
    %v46 = vpop.xlane.xlu0 %45
    %47 = vadd.xlane.f32.xlu0 %v35
    %v48 = vpop.xlane.xlu0 %47
    %49 = vadd.xlane.f32.xlu0 %v36
    %v50 = vpop.xlane.xlu0 %49
    %51 = vadd.xlane.f32.xlu0 %v37
    %v52 = vpop.xlane.xlu0 %51
    %53 = vadd.xlane.f32.xlu0 %v38
    %v54 = vpop.xlane.xlu0 %53
    %v55 = vrcp.pop 128.0
    %v56 = vmul.f32 %v40, %v55
    %v57 = vmul.f32 %v42, %v55
    %v58 = vmul.f32 %v44, %v55
    %v59 = vmul.f32 %v46, %v55
    %v60 = vmul.f32 %v48, %v55
    %v61 = vmul.f32 %v50, %v55
    %v62 = vmul.f32 %v52, %v55
    %v63 = vmul.f32 %v54, %v55
    %vm64 = vcmp.gt.f32.partialorder %v23, 0.0
    %vm65 = vcmp.gt.f32.partialorder %v24, 0.0
    %vm66 = vcmp.gt.f32.partialorder %v25, 0.0
    %vm67 = vcmp.gt.f32.partialorder %v26, 0.0
    %vm68 = vcmp.gt.f32.partialorder %v27, 0.0
    %vm69 = vcmp.gt.f32.partialorder %v28, 0.0
    %vm70 = vcmp.gt.f32.partialorder %v29, 0.0
    %vm71 = vcmp.gt.f32.partialorder %v30, 0.0
    %vm72 = vcmp.lt.f32.partialorder %v23, 0.0
    %vm73 = vcmp.lt.f32.partialorder %v24, 0.0
    %vm74 = vcmp.lt.f32.partialorder %v25, 0.0
    %vm75 = vcmp.lt.f32.partialorder %v26, 0.0
    %vm76 = vcmp.lt.f32.partialorder %v27, 0.0
    %vm77 = vcmp.lt.f32.partialorder %v28, 0.0
    %vm78 = vcmp.lt.f32.partialorder %v29, 0.0
    %vm79 = vcmp.lt.f32.partialorder %v30, 0.0
    %v80 = vsub.f32 0.0, %v56
    %v81 = vsub.f32 0.0, %v57
    %v82 = vsub.f32 0.0, %v58
    %v83 = vsub.f32 0.0, %v59
    %v84 = vsub.f32 0.0, %v60
    %v85 = vsub.f32 0.0, %v61
    %v86 = vsub.f32 0.0, %v62
    %v87 = vsub.f32 0.0, %v63
    %v88 = vsel %vm72, %v80, 0.0
    %v89 = vsel %vm73, %v81, 0.0
    %v90 = vsel %vm74, %v82, 0.0
    %v91 = vsel %vm75, %v83, 0.0
    %v92 = vsel %vm76, %v84, 0.0
    %v93 = vsel %vm77, %v85, 0.0
    %v94 = vsel %vm78, %v86, 0.0
    %v95 = vsel %vm79, %v87, 0.0
    %v96 = vsel %vm64, %v56, %v88
    %v97 = vsel %vm65, %v57, %v89
    %v98 = vsel %vm66, %v58, %v90
    %v99 = vsel %vm67, %v59, %v91
    %v100 = vsel %vm68, %v60, %v92
    %v101 = vsel %vm69, %v61, %v93
    %v102 = vsel %vm70, %v62, %v94
    %v103 = vsel %vm71, %v63, %v95
    %104 = vst [vmem:[#allocation5] sm:$0xff] %v96
    %105 = vst [vmem:[#allocation5 + $0x8] sm:$0xff] %v97
    %106 = vst [vmem:[#allocation5 + $0x10] sm:$0xff] %v98
    %107 = vst [vmem:[#allocation5 + $0x18] sm:$0xff] %v99
    %108 = vst [vmem:[#allocation5 + $0x20] sm:$0xff] %v100
    %109 = vst [vmem:[#allocation5 + $0x28] sm:$0xff] %v101
    %110 = vst [vmem:[#allocation5 + $0x30] sm:$0xff] %v102
    %111 = vst [vmem:[#allocation5 + $0x38] sm:$0xff] %v103
    // Predicated region
    $region10: #{tpu_custom_call.1} parent=1 // pred_check
      _
    $region11: #{tpu_custom_call.1} parent=1 // pred_check_branch
      %113 = sbr.rel (0) target = $region13
    $region12: #{tpu_custom_call.1} parent=1 // pred_region
      %s115 = ssub.s32 1024, 1024
      %116 = vsyncadd [#allocation4], %s115
      %s117 = sshll.u32 [#allocation5], 4
      %s118 = int_to_ptr.vmem [resolvable:$true] %s117
      %123 = dma.vmem_to_hbm [thread:$0]  %s118, 1024, %s1, [#allocation4], 128, 128, 8
    $region13: #{tpu_custom_call.1} parent=1 // pred_fallthru
      _
    // Predicated region
    $region14: #{tpu_custom_call.1} parent=1 // pred_check
      _
    $region15: #{tpu_custom_call.1} parent=1 // pred_check_branch
      %125 = sbr.rel (0) target = $region17
    $region16: #{tpu_custom_call.1} parent=1 // pred_region
      %126 = dma.done [#allocation4], 1024
    $region17: #{tpu_custom_call.1} parent=1 // pred_fallthru
      _
    %127 = vsyncpa [#allocation3], 1
    %128 = vsyncpa [#allocation4], 1

</llo_original>
